<compile_context>
chip_gen: v6e
topology: v6e:2x2x1
jax: 0.10.0
libtpu: 0.0.40
codegen_flags: <defaults>
</compile_context>

<pallas_src>
import jax
import jax.numpy as jnp
from jax.experimental import pallas as pl
from jax.experimental.pallas import tpu as pltpu


def _make_kwinners_kernel(k_eff: int, n_pad: int, apply_boost: bool):
    """Build a kernel with static k / boost flag / padded lane count baked in."""

    def body(x_ref, boost_ref, out_ref):
        x = x_ref[...].astype(jnp.float32)                       # (TB, n_pad)
        lane_ids = jax.lax.broadcasted_iota(jnp.int32, (1, n_pad), 1)

        boosted = x * boost_ref[...] if boost_ref is not None else x

        neg_inf = jnp.float32(-jnp.inf)
        oob_idx = jnp.int32(n_pad)
        cur = boosted

        # Iterative exact top-k: k_eff is a small static int, unrolled in
        # Python so the scheduler sees the full chain. Ties are broken by the
        # lowest lane index (matches jax.lax.top_k / deterministic torch-like
        # behaviour, always yields exactly k winners).
        for _ in range(k_eff):
            row_max = jnp.max(cur, axis=1, keepdims=True)                    # XLU
            win_idx = jnp.min(
                jnp.where(cur == row_max, lane_ids, oob_idx),
                axis=1, keepdims=True)                                       # XLU
            cur = jnp.where(lane_ids == win_idx, neg_inf, cur)

        # Winners are exactly the lanes knocked strictly below their boosted
        # value; -inf padded lanes stay equal to boosted -> 0.
        out_ref[...] = (cur < boosted).astype(out_ref.dtype)

    if apply_boost:
        def kernel(x_ref, boost_ref, out_ref):
            body(x_ref, boost_ref, out_ref)
    else:
        def kernel(x_ref, out_ref):
            body(x_ref, None, out_ref)
    return kernel


def _choose_block_rows(batch: int, n_pad: int, itemsize: int) -> int:
    """Batch tile that keeps 2x double-buffered in + out tiles plus ~4 f32
    temporaries within the smallest default scoped-VMEM budget (v5e: 16 MiB)."""
    per_row_bytes = n_pad * (4 * itemsize + 4 * 4)
    budget = 10 * 1024 * 1024
    tb = max(8, min(1024, budget // per_row_bytes))
    if tb >= batch:
        return batch                      # one full-batch block (block dim == array dim)
    return max(8, (tb // 8) * 8)          # keep sublane (second-minor) dim 8-aligned


def kwinners_forward(
    x: jax.Array,
    duty_cycle: jax.Array,
    *,
    n: int,
    k: int,
    k_inference_factor: float = 1.0,
    boost_strength: float = 1.0,
    training: bool = False,
) -> jax.Array:
    """Pallas implementation of KWinners.forward (inference or training k)."""
    assert x.ndim == 2 and x.shape[1] == n
    assert duty_cycle.shape == (n,)
    assert jnp.issubdtype(x.dtype, jnp.floating)

    # k >= n short-circuits to ReLU in the torch module.
    if k >= n:
        return jnp.maximum(x, 0)

    k_eff = k if training else min(int(round(k * k_inference_factor)), n)
    if k_eff >= n:
        # topk over all n indices -> every unit is a winner.
        return jnp.ones_like(x)
    if k_eff <= 0:
        return jnp.zeros_like(x)

    B = x.shape[0]
    n_pad = ((n + 127) // 128) * 128
    apply_boost = float(boost_strength) > 0.0

    # Pad x with -inf so padded lanes can never win (no in-kernel lane mask).
    x_in = x
    if n_pad != n:
        x_in = jnp.pad(x, ((0, 0), (0, n_pad - n)), constant_values=-jnp.inf)

    tb = _choose_block_rows(B, n_pad, x.dtype.itemsize)
    grid = (pl.cdiv(B, tb),)

    inputs = [x_in]
    in_specs = [pl.BlockSpec((tb, n_pad), lambda i: (i, 0))]   # batch tile of x

    if apply_boost:
        # Precompute boost factors once in the wrapper (no per-tile exp).
        # targetDensity uses the k actually passed to k_winners.apply (k_eff),
        # exactly as in the reference module.
        target_density = float(k_eff) / float(n)
        boost = jnp.exp(
            (target_density - duty_cycle.astype(jnp.float32)) * float(boost_strength)
        )
        boost2d = boost.reshape(1, n)
        if n_pad != n:
            # Pad with 1.0 so (-inf) * boost stays -inf (never NaN).
            boost2d = jnp.pad(boost2d, ((0, 0), (0, n_pad - n)), constant_values=1.0)
        inputs.append(boost2d)
        in_specs.append(pl.BlockSpec((1, n_pad), lambda i: (0, 0)))  # replicated row

    kernel = _make_kwinners_kernel(k_eff, n_pad, apply_boost)

    out = pl.pallas_call(
        kernel,
        out_shape=jax.ShapeDtypeStruct((B, n_pad), x.dtype),
        grid=grid,
        in_specs=in_specs,
        out_specs=pl.BlockSpec((tb, n_pad), lambda i: (i, 0)),
        compiler_params=pltpu.CompilerParams(
            dimension_semantics=("parallel",)              # batch tiles shard across TCs
        ),
    )(*inputs)

    if n_pad != n:
        out = out[:, :n]
    return out


if __name__ == "__main__":
    # --- Test 1: module-like config, boosted inference path ------------------
    n = 32
    k = 8
    batch = 2
    boost_strength = 1.0
    k_inference_factor = 1.0

    key = jax.random.PRNGKey(0)
    x = jax.random.normal(key, (batch, n), dtype=jnp.float32)
    # Matches KWinners.__init__: register_buffer('dutyCycle', torch.zeros(n))
    duty_cycle = jnp.zeros((n,), dtype=jnp.float32)

    out = kwinners_forward(
        x, duty_cycle, n=n, k=k,
        k_inference_factor=k_inference_factor,
        boost_strength=boost_strength, training=False,
    )
    out = jax.block_until_ready(out)

    assert out.shape == (batch, n)
    assert out.dtype == x.dtype
    assert bool(jnp.all(jnp.sum(out, axis=1) == k)), jnp.sum(out, axis=1)

    target_density = float(k) / float(n)
    boosted_ref = x * jnp.exp((target_density - duty_cycle) * boost_strength)
    _, ref_idx = jax.lax.top_k(boosted_ref, k)
    ref_mask = jnp.zeros_like(x).at[jnp.arange(batch)[:, None], ref_idx].set(1.0)
    assert bool(jnp.all(out == ref_mask))

    # --- Test 2: non-multiple-of-128 n (padding path), boostStrength == 0 ----
    n2, k2, batch2 = 200, 10, 8
    x2 = jax.random.normal(jax.random.PRNGKey(1), (batch2, n2), dtype=jnp.float32)
    duty2 = jnp.zeros((n2,), dtype=jnp.float32)
    out2 = jax.block_until_ready(
        kwinners_forward(x2, duty2, n=n2, k=k2, boost_strength=0.0, training=True)
    )
    assert out2.shape == (batch2, n2)
    assert bool(jnp.all(jnp.sum(out2, axis=1) == k2))
    _, ref_idx2 = jax.lax.top_k(x2, k2)
    ref_mask2 = jnp.zeros_like(x2).at[jnp.arange(batch2)[:, None], ref_idx2].set(1.0)
    assert bool(jnp.all(out2 == ref_mask2))

    # --- Test 3: k >= n short-circuit (ReLU path) -----------------------------
    x3 = jax.random.normal(jax.random.PRNGKey(2), (4, 16), dtype=jnp.float32)
    out3 = jax.block_until_ready(
        kwinners_forward(x3, jnp.zeros((16,), jnp.float32), n=16, k=16, training=True)
    )
    assert bool(jnp.all(out3 == jnp.maximum(x3, 0)))

    print("KERNEL_OK")
</pallas_src>

<mosaic_0001>
module attributes {stable_mosaic.version = 11 : i64} {
  func.func @kernel(%arg0: i32, %arg1: memref<2x128xf32, #tpu.memory_space<vmem>>, %arg2: memref<1x128xf32, #tpu.memory_space<vmem>>, %arg3: memref<2x128xf32, #tpu.memory_space<vmem>>) attributes {dimension_semantics = [#tpu.dimension_semantics<parallel>], iteration_bounds = array<i64: 1>, scalar_prefetch = 0 : i64, scratch_operands = 0 : i64, tpu.core_type = #tpu.core_type<tc>, window_params = [{transform_indices = @transform_0, window_bounds = array<i64: 2, 128>}, {pipeline_mode = #tpu.pipeline_mode<synchronous>, transform_indices = @transform_1, window_bounds = array<i64: 1, 128>}, {transform_indices = @transform_2, window_bounds = array<i64: 2, 128>}]} {
    %c0 = arith.constant 0 : index
    %c0_0 = arith.constant 0 : index
    %0 = vector.load %arg1[%c0, %c0_0] : memref<2x128xf32, #tpu.memory_space<vmem>>, vector<2x128xf32>
    %1 = tpu.iota {dimensions = array<i32: 1>} : vector<1x128xi32>
    %c0_1 = arith.constant 0 : index
    %c0_2 = arith.constant 0 : index
    %2 = vector.load %arg2[%c0_1, %c0_2] : memref<1x128xf32, #tpu.memory_space<vmem>>, vector<1x128xf32>
    %3 = vector.broadcast %2 : vector<1x128xf32> to vector<2x128xf32>
    %4 = arith.mulf %0, %3 : vector<2x128xf32>
    %cst = arith.constant dense<0xFF800000> : vector<2xf32>
    %5 = vector.multi_reduction <maximumf>, %4, %cst [1] : vector<2x128xf32> to vector<2xf32>
    %6 = vector.shape_cast %5 : vector<2xf32> to vector<2x1xf32>
    %7 = vector.broadcast %6 : vector<2x1xf32> to vector<2x128xf32>
    %8 = arith.cmpf oeq, %4, %7 : vector<2x128xf32>
    %c128_i32 = arith.constant 128 : i32
    %9 = vector.shape_cast %1 : vector<1x128xi32> to vector<1x128xi32>
    %10 = vector.broadcast %9 : vector<1x128xi32> to vector<2x128xi32>
    %11 = vector.broadcast %c128_i32 : i32 to vector<2x128xi32>
    %12 = arith.select %8, %10, %11 : vector<2x128xi1>, vector<2x128xi32>
    %cst_3 = arith.constant dense<2147483647> : vector<2xi32>
    %13 = vector.multi_reduction <minsi>, %12, %cst_3 [1] : vector<2x128xi32> to vector<2xi32>
    %14 = vector.shape_cast %13 : vector<2xi32> to vector<2x1xi32>
    %15 = vector.broadcast %1 : vector<1x128xi32> to vector<2x128xi32>
    %16 = vector.broadcast %14 : vector<2x1xi32> to vector<2x128xi32>
    %17 = arith.cmpi eq, %15, %16 : vector<2x128xi32>
    %cst_4 = arith.constant 0xFF800000 : f32
    %18 = vector.broadcast %cst_4 : f32 to vector<2x128xf32>
    %19 = arith.select %17, %18, %4 : vector<2x128xi1>, vector<2x128xf32>
    %cst_5 = arith.constant dense<0xFF800000> : vector<2xf32>
    %20 = vector.multi_reduction <maximumf>, %19, %cst_5 [1] : vector<2x128xf32> to vector<2xf32>
    %21 = vector.shape_cast %20 : vector<2xf32> to vector<2x1xf32>
    %22 = vector.broadcast %21 : vector<2x1xf32> to vector<2x128xf32>
    %23 = arith.cmpf oeq, %19, %22 : vector<2x128xf32>
    %c128_i32_6 = arith.constant 128 : i32
    %24 = vector.shape_cast %1 : vector<1x128xi32> to vector<1x128xi32>
    %25 = vector.broadcast %24 : vector<1x128xi32> to vector<2x128xi32>
    %26 = vector.broadcast %c128_i32_6 : i32 to vector<2x128xi32>
    %27 = arith.select %23, %25, %26 : vector<2x128xi1>, vector<2x128xi32>
    %cst_7 = arith.constant dense<2147483647> : vector<2xi32>
    %28 = vector.multi_reduction <minsi>, %27, %cst_7 [1] : vector<2x128xi32> to vector<2xi32>
    %29 = vector.shape_cast %28 : vector<2xi32> to vector<2x1xi32>
    %30 = vector.broadcast %1 : vector<1x128xi32> to vector<2x128xi32>
    %31 = vector.broadcast %29 : vector<2x1xi32> to vector<2x128xi32>
    %32 = arith.cmpi eq, %30, %31 : vector<2x128xi32>
    %cst_8 = arith.constant 0xFF800000 : f32
    %33 = vector.broadcast %cst_8 : f32 to vector<2x128xf32>
    %34 = arith.select %32, %33, %19 : vector<2x128xi1>, vector<2x128xf32>
    %cst_9 = arith.constant dense<0xFF800000> : vector<2xf32>
    %35 = vector.multi_reduction <maximumf>, %34, %cst_9 [1] : vector<2x128xf32> to vector<2xf32>
    %36 = vector.shape_cast %35 : vector<2xf32> to vector<2x1xf32>
    %37 = vector.broadcast %36 : vector<2x1xf32> to vector<2x128xf32>
    %38 = arith.cmpf oeq, %34, %37 : vector<2x128xf32>
    %c128_i32_10 = arith.constant 128 : i32
    %39 = vector.shape_cast %1 : vector<1x128xi32> to vector<1x128xi32>
    %40 = vector.broadcast %39 : vector<1x128xi32> to vector<2x128xi32>
    %41 = vector.broadcast %c128_i32_10 : i32 to vector<2x128xi32>
    %42 = arith.select %38, %40, %41 : vector<2x128xi1>, vector<2x128xi32>
    %cst_11 = arith.constant dense<2147483647> : vector<2xi32>
    %43 = vector.multi_reduction <minsi>, %42, %cst_11 [1] : vector<2x128xi32> to vector<2xi32>
    %44 = vector.shape_cast %43 : vector<2xi32> to vector<2x1xi32>
    %45 = vector.broadcast %1 : vector<1x128xi32> to vector<2x128xi32>
    %46 = vector.broadcast %44 : vector<2x1xi32> to vector<2x128xi32>
    %47 = arith.cmpi eq, %45, %46 : vector<2x128xi32>
    %cst_12 = arith.constant 0xFF800000 : f32
    %48 = vector.broadcast %cst_12 : f32 to vector<2x128xf32>
    %49 = arith.select %47, %48, %34 : vector<2x128xi1>, vector<2x128xf32>
    %cst_13 = arith.constant dense<0xFF800000> : vector<2xf32>
    %50 = vector.multi_reduction <maximumf>, %49, %cst_13 [1] : vector<2x128xf32> to vector<2xf32>
    %51 = vector.shape_cast %50 : vector<2xf32> to vector<2x1xf32>
    %52 = vector.broadcast %51 : vector<2x1xf32> to vector<2x128xf32>
    %53 = arith.cmpf oeq, %49, %52 : vector<2x128xf32>
    %c128_i32_14 = arith.constant 128 : i32
    %54 = vector.shape_cast %1 : vector<1x128xi32> to vector<1x128xi32>
    %55 = vector.broadcast %54 : vector<1x128xi32> to vector<2x128xi32>
    %56 = vector.broadcast %c128_i32_14 : i32 to vector<2x128xi32>
    %57 = arith.select %53, %55, %56 : vector<2x128xi1>, vector<2x128xi32>
    %cst_15 = arith.constant dense<2147483647> : vector<2xi32>
    %58 = vector.multi_reduction <minsi>, %57, %cst_15 [1] : vector<2x128xi32> to vector<2xi32>
    %59 = vector.shape_cast %58 : vector<2xi32> to vector<2x1xi32>
    %60 = vector.broadcast %1 : vector<1x128xi32> to vector<2x128xi32>
    %61 = vector.broadcast %59 : vector<2x1xi32> to vector<2x128xi32>
    %62 = arith.cmpi eq, %60, %61 : vector<2x128xi32>
    %cst_16 = arith.constant 0xFF800000 : f32
    %63 = vector.broadcast %cst_16 : f32 to vector<2x128xf32>
    %64 = arith.select %62, %63, %49 : vector<2x128xi1>, vector<2x128xf32>
    %cst_17 = arith.constant dense<0xFF800000> : vector<2xf32>
    %65 = vector.multi_reduction <maximumf>, %64, %cst_17 [1] : vector<2x128xf32> to vector<2xf32>
    %66 = vector.shape_cast %65 : vector<2xf32> to vector<2x1xf32>
    %67 = vector.broadcast %66 : vector<2x1xf32> to vector<2x128xf32>
    %68 = arith.cmpf oeq, %64, %67 : vector<2x128xf32>
    %c128_i32_18 = arith.constant 128 : i32
    %69 = vector.shape_cast %1 : vector<1x128xi32> to vector<1x128xi32>
    %70 = vector.broadcast %69 : vector<1x128xi32> to vector<2x128xi32>
    %71 = vector.broadcast %c128_i32_18 : i32 to vector<2x128xi32>
    %72 = arith.select %68, %70, %71 : vector<2x128xi1>, vector<2x128xi32>
    %cst_19 = arith.constant dense<2147483647> : vector<2xi32>
    %73 = vector.multi_reduction <minsi>, %72, %cst_19 [1] : vector<2x128xi32> to vector<2xi32>
    %74 = vector.shape_cast %73 : vector<2xi32> to vector<2x1xi32>
    %75 = vector.broadcast %1 : vector<1x128xi32> to vector<2x128xi32>
    %76 = vector.broadcast %74 : vector<2x1xi32> to vector<2x128xi32>
    %77 = arith.cmpi eq, %75, %76 : vector<2x128xi32>
    %cst_20 = arith.constant 0xFF800000 : f32
    %78 = vector.broadcast %cst_20 : f32 to vector<2x128xf32>
    %79 = arith.select %77, %78, %64 : vector<2x128xi1>, vector<2x128xf32>
    %cst_21 = arith.constant dense<0xFF800000> : vector<2xf32>
    %80 = vector.multi_reduction <maximumf>, %79, %cst_21 [1] : vector<2x128xf32> to vector<2xf32>
    %81 = vector.shape_cast %80 : vector<2xf32> to vector<2x1xf32>
    %82 = vector.broadcast %81 : vector<2x1xf32> to vector<2x128xf32>
    %83 = arith.cmpf oeq, %79, %82 : vector<2x128xf32>
    %c128_i32_22 = arith.constant 128 : i32
    %84 = vector.shape_cast %1 : vector<1x128xi32> to vector<1x128xi32>
    %85 = vector.broadcast %84 : vector<1x128xi32> to vector<2x128xi32>
    %86 = vector.broadcast %c128_i32_22 : i32 to vector<2x128xi32>
    %87 = arith.select %83, %85, %86 : vector<2x128xi1>, vector<2x128xi32>
    %cst_23 = arith.constant dense<2147483647> : vector<2xi32>
    %88 = vector.multi_reduction <minsi>, %87, %cst_23 [1] : vector<2x128xi32> to vector<2xi32>
    %89 = vector.shape_cast %88 : vector<2xi32> to vector<2x1xi32>
    %90 = vector.broadcast %1 : vector<1x128xi32> to vector<2x128xi32>
    %91 = vector.broadcast %89 : vector<2x1xi32> to vector<2x128xi32>
    %92 = arith.cmpi eq, %90, %91 : vector<2x128xi32>
    %cst_24 = arith.constant 0xFF800000 : f32
    %93 = vector.broadcast %cst_24 : f32 to vector<2x128xf32>
    %94 = arith.select %92, %93, %79 : vector<2x128xi1>, vector<2x128xf32>
    %cst_25 = arith.constant dense<0xFF800000> : vector<2xf32>
    %95 = vector.multi_reduction <maximumf>, %94, %cst_25 [1] : vector<2x128xf32> to vector<2xf32>
    %96 = vector.shape_cast %95 : vector<2xf32> to vector<2x1xf32>
    %97 = vector.broadcast %96 : vector<2x1xf32> to vector<2x128xf32>
    %98 = arith.cmpf oeq, %94, %97 : vector<2x128xf32>
    %c128_i32_26 = arith.constant 128 : i32
    %99 = vector.shape_cast %1 : vector<1x128xi32> to vector<1x128xi32>
    %100 = vector.broadcast %99 : vector<1x128xi32> to vector<2x128xi32>
    %101 = vector.broadcast %c128_i32_26 : i32 to vector<2x128xi32>
    %102 = arith.select %98, %100, %101 : vector<2x128xi1>, vector<2x128xi32>
    %cst_27 = arith.constant dense<2147483647> : vector<2xi32>
    %103 = vector.multi_reduction <minsi>, %102, %cst_27 [1] : vector<2x128xi32> to vector<2xi32>
    %104 = vector.shape_cast %103 : vector<2xi32> to vector<2x1xi32>
    %105 = vector.broadcast %1 : vector<1x128xi32> to vector<2x128xi32>
    %106 = vector.broadcast %104 : vector<2x1xi32> to vector<2x128xi32>
    %107 = arith.cmpi eq, %105, %106 : vector<2x128xi32>
    %cst_28 = arith.constant 0xFF800000 : f32
    %108 = vector.broadcast %cst_28 : f32 to vector<2x128xf32>
    %109 = arith.select %107, %108, %94 : vector<2x128xi1>, vector<2x128xf32>
    %cst_29 = arith.constant dense<0xFF800000> : vector<2xf32>
    %110 = vector.multi_reduction <maximumf>, %109, %cst_29 [1] : vector<2x128xf32> to vector<2xf32>
    %111 = vector.shape_cast %110 : vector<2xf32> to vector<2x1xf32>
    %112 = vector.broadcast %111 : vector<2x1xf32> to vector<2x128xf32>
    %113 = arith.cmpf oeq, %109, %112 : vector<2x128xf32>
    %c128_i32_30 = arith.constant 128 : i32
    %114 = vector.shape_cast %1 : vector<1x128xi32> to vector<1x128xi32>
    %115 = vector.broadcast %114 : vector<1x128xi32> to vector<2x128xi32>
    %116 = vector.broadcast %c128_i32_30 : i32 to vector<2x128xi32>
    %117 = arith.select %113, %115, %116 : vector<2x128xi1>, vector<2x128xi32>
    %cst_31 = arith.constant dense<2147483647> : vector<2xi32>
    %118 = vector.multi_reduction <minsi>, %117, %cst_31 [1] : vector<2x128xi32> to vector<2xi32>
    %119 = vector.shape_cast %118 : vector<2xi32> to vector<2x1xi32>
    %120 = vector.broadcast %1 : vector<1x128xi32> to vector<2x128xi32>
    %121 = vector.broadcast %119 : vector<2x1xi32> to vector<2x128xi32>
    %122 = arith.cmpi eq, %120, %121 : vector<2x128xi32>
    %cst_32 = arith.constant 0xFF800000 : f32
    %123 = vector.broadcast %cst_32 : f32 to vector<2x128xf32>
    %124 = arith.select %122, %123, %109 : vector<2x128xi1>, vector<2x128xf32>
    %125 = arith.cmpf olt, %124, %4 : vector<2x128xf32>
    %126 = arith.extui %125 : vector<2x128xi1> to vector<2x128xi32>
    %127 = arith.sitofp %126 : vector<2x128xi32> to vector<2x128xf32>
    %c0_33 = arith.constant 0 : index
    %c0_34 = arith.constant 0 : index
    %128 = vector.load %arg3[%c0_33, %c0_34] : memref<2x128xf32, #tpu.memory_space<vmem>>, vector<2x128xf32>
    tpu.vector_store %arg3[%c0_33, %c0_34], %127 {strides = array<i32>} : memref<2x128xf32, #tpu.memory_space<vmem>>, vector<2x128xf32>,
    return
  }
  func.func @transform_0(%arg0: i32) -> (i32, i32) {
    %c0_i32 = arith.constant 0 : i32
    %c0_i32_0 = arith.constant 0 : i32
    return %arg0, %c0_i32 : i32, i32
  }
  func.func @transform_1(%arg0: i32) -> (i32, i32) {
    %c0_i32 = arith.constant 0 : i32
    %c0_i32_0 = arith.constant 0 : i32
    %c0_i32_1 = arith.constant 0 : i32
    return %c0_i32, %c0_i32_0 : i32, i32
  }
  func.func @transform_2(%arg0: i32) -> (i32, i32) {
    %c0_i32 = arith.constant 0 : i32
    %c0_i32_0 = arith.constant 0 : i32
    return %arg0, %c0_i32 : i32, i32
  }
}

</mosaic_0001>

<llo_original>
// kernel: tpu_custom_call.1
$region0: #{tpu_custom_call.1}
  #allocation0 [shape = 'u32[]', space=smem, size = 0x4, offset = 0x4, fixed_abs, tag = 'smem constant byte address 0x4 - core index']
  #allocation1 [shape = 'u32[144,128]{1,0:T(1,128)}', space=vmem, size = 0x12000, scoped, tag = 'internal scratch']
  %s0 = inlined_call_operand.hbm [shape: f32[2,128], index: 0, kind: input, shape index: {}]
  %s1 = inlined_call_operand.vmem [shape: f32[1,128], index: 1, kind: input, shape index: {}]
  %s2 = inlined_call_operand.hbm [shape: f32[2,128], index: 2, kind: output, shape index: {}]
  %s3 = sld [smem:[#allocation0]]
  $region22: #{tpu_custom_call.1} parent=0
    _
  %s5 = ssub.s32 1, %s3
  %s6 = scalar_select 0, %s5, %s3
  $region1: #{tpu_custom_call.1} parent=0
    #allocation2 [shape = 'u8[1024]{0}', space=vmem, size = 0x400, scoped, tag = 'input window, operand 0, single buffered']
    #allocation3 [shape = 's32[1]{0}', space=sflag, size = 0x4, scoped, tag = 'scoped memory for tpu_custom_call.1']
    #allocation4 [shape = 's32[1]{0}', space=sflag, size = 0x4, scoped, tag = 'scoped memory for tpu_custom_call.1']
    #allocation5 [shape = 'u8[1024]{0}', space=vmem, size = 0x400, scoped, tag = 'output window, operand 0, single buffered']
    %7 = vsyncpa [#allocation3], 0
    %8 = vsyncpa [#allocation4], 0
    // Predicated region
    $region2: #{tpu_custom_call.1} parent=1 // pred_check
      _
    $region3: #{tpu_custom_call.1} parent=1 // pred_check_branch
      %10 = sbr.rel (0) target = $region5
    $region4: #{tpu_custom_call.1} parent=1 // pred_region
      %s12 = ssub.s32 32, 32
      %13 = vsyncadd [#allocation3], %s12
      %s15 = sshll.u32 [#allocation2], 4
      %s16 = int_to_ptr.vmem [resolvable:$true] %s15
      %18 = dma.hbm_to_vmem [thread:$0]  %s0, 32, %s16, [#allocation3]
    $region5: #{tpu_custom_call.1} parent=1 // pred_fallthru
      _
    // Predicated region
    $region6: #{tpu_custom_call.1} parent=1 // pred_check
      _
    $region7: #{tpu_custom_call.1} parent=1 // pred_check_branch
      %20 = sbr.rel (0) target = $region9
    $region8: #{tpu_custom_call.1} parent=1 // pred_region
      _
    $region9: #{tpu_custom_call.1} parent=1 // pred_fallthru
      _
    // Predicated region
    $region10: #{tpu_custom_call.1} parent=1 // pred_check
      _
    $region11: #{tpu_custom_call.1} parent=1 // pred_check_branch
      %22 = sbr.rel (0) target = $region13
    $region12: #{tpu_custom_call.1} parent=1 // pred_region
      %23 = dma.done [#allocation3], 32
    $region13: #{tpu_custom_call.1} parent=1 // pred_fallthru
      _
    %v24 = vld [vmem:[#allocation2] sm:$0x3]
    %v25 = vlaneseq
    %v26 = vand.u32 %v25, 127
    %v27 = vld [vmem:[%s1] sm:$0x1]
    %v29 = vlaneseq
    %v30 = vshrl.u32 %v29, 7
    %v31 = vsub.s32 0, %v30
    %v32 = vrot.slane %v27, %v31
    %v34 = vmul.f32 %v24, %v32
    %vm35 = vcmask 1041408
    %v36 = vsel %vm35, %v34, -inf
    %37 = vmax.xlane.f32.xlu0 %v36
    %v38 = vpop.xlane.xlu0 %37
    %vm39 = vcmp.eq.f32.partialorder %v34, %v38
    %v40 = vsel %vm39, %v26, 128
    %v41 = vsel %vm35, %v40, 2147483647
    %v42 = vand.u32 %v41, 65535
    %v43 = vshra.s32 %v41, 16
    %v44 = vcvt.s32.f32 %v42
    %v45 = vcvt.s32.f32 %v43
    %46 = vmin.xlane.f32.xlu0 %v45
    %v47 = vpop.xlane.xlu0 %46
    %vm48 = vcmp.eq.f32.partialorder %v45, %v47
    %v49 = vsel %vm48, %v44, inf
    %50 = vmin.xlane.f32.xlu0 %v49
    %v51 = vpop.xlane.xlu0 %50
    %v52 = vcvt.f32.s32 %v51
    %v53 = vcvt.f32.s32 %v47
    %v54 = vshll.u32 %v53, 16
    %v55 = vadd.s32 %v54, %v52
    %vm56 = vcmp.eq.s32.totalorder %v26, %v55
    %v57 = vsel %vm56, -inf, %v34
    %v58 = vsel %vm35, %v57, -inf
    %59 = vmax.xlane.f32.xlu0 %v58
    %v60 = vpop.xlane.xlu0 %59
    %vm61 = vcmp.eq.f32.partialorder %v57, %v60
    %v62 = vsel %vm61, %v26, 128
    %v63 = vsel %vm35, %v62, 2147483647
    %v64 = vand.u32 %v63, 65535
    %v65 = vshra.s32 %v63, 16
    %v66 = vcvt.s32.f32 %v64
    %v67 = vcvt.s32.f32 %v65
    %68 = vmin.xlane.f32.xlu0 %v67
    %v69 = vpop.xlane.xlu0 %68
    %vm70 = vcmp.eq.f32.partialorder %v67, %v69
    %v71 = vsel %vm70, %v66, inf
    %72 = vmin.xlane.f32.xlu0 %v71
    %v73 = vpop.xlane.xlu0 %72
    %v74 = vcvt.f32.s32 %v73
    %v75 = vcvt.f32.s32 %v69
    %v76 = vshll.u32 %v75, 16
    %v77 = vadd.s32 %v76, %v74
    %vm78 = vcmp.eq.s32.totalorder %v26, %v77
    %v79 = vsel %vm78, -inf, %v57
    %v80 = vsel %vm35, %v79, -inf
    %81 = vmax.xlane.f32.xlu0 %v80
    %v82 = vpop.xlane.xlu0 %81
    %vm83 = vcmp.eq.f32.partialorder %v79, %v82
    %v84 = vsel %vm83, %v26, 128
    %v85 = vsel %vm35, %v84, 2147483647
    %v86 = vand.u32 %v85, 65535
    %v87 = vshra.s32 %v85, 16
    %v88 = vcvt.s32.f32 %v86
    %v89 = vcvt.s32.f32 %v87
    %90 = vmin.xlane.f32.xlu0 %v89
    %v91 = vpop.xlane.xlu0 %90
    %vm92 = vcmp.eq.f32.partialorder %v89, %v91
    %v93 = vsel %vm92, %v88, inf
    %94 = vmin.xlane.f32.xlu0 %v93
    %v95 = vpop.xlane.xlu0 %94
    %v96 = vcvt.f32.s32 %v95
    %v97 = vcvt.f32.s32 %v91
    %v98 = vshll.u32 %v97, 16
    %v99 = vadd.s32 %v98, %v96
    %vm100 = vcmp.eq.s32.totalorder %v26, %v99
    %v101 = vsel %vm100, -inf, %v79
    %v102 = vsel %vm35, %v101, -inf
    %103 = vmax.xlane.f32.xlu0 %v102
    %v104 = vpop.xlane.xlu0 %103
    %vm105 = vcmp.eq.f32.partialorder %v101, %v104
    %v106 = vsel %vm105, %v26, 128
    %v107 = vsel %vm35, %v106, 2147483647
    %v108 = vand.u32 %v107, 65535
    %v109 = vshra.s32 %v107, 16
    %v110 = vcvt.s32.f32 %v108
    %v111 = vcvt.s32.f32 %v109
    %112 = vmin.xlane.f32.xlu0 %v111
    %v113 = vpop.xlane.xlu0 %112
    %vm114 = vcmp.eq.f32.partialorder %v111, %v113
    %v115 = vsel %vm114, %v110, inf
    %116 = vmin.xlane.f32.xlu0 %v115
    %v117 = vpop.xlane.xlu0 %116
    %v118 = vcvt.f32.s32 %v117
    %v119 = vcvt.f32.s32 %v113
    %v120 = vshll.u32 %v119, 16
    %v121 = vadd.s32 %v120, %v118
    %vm122 = vcmp.eq.s32.totalorder %v26, %v121
    %v123 = vsel %vm122, -inf, %v101
    %v124 = vsel %vm35, %v123, -inf
    %125 = vmax.xlane.f32.xlu0 %v124
    %v126 = vpop.xlane.xlu0 %125
    %vm127 = vcmp.eq.f32.partialorder %v123, %v126
    %v128 = vsel %vm127, %v26, 128
    %v129 = vsel %vm35, %v128, 2147483647
    %v130 = vand.u32 %v129, 65535
    %v131 = vshra.s32 %v129, 16
    %v132 = vcvt.s32.f32 %v130
    %v133 = vcvt.s32.f32 %v131
    %134 = vmin.xlane.f32.xlu0 %v133
    %v135 = vpop.xlane.xlu0 %134
    %vm136 = vcmp.eq.f32.partialorder %v133, %v135
    %v137 = vsel %vm136, %v132, inf
    %138 = vmin.xlane.f32.xlu0 %v137
    %v139 = vpop.xlane.xlu0 %138
    %v140 = vcvt.f32.s32 %v139
    %v141 = vcvt.f32.s32 %v135
    %v142 = vshll.u32 %v141, 16
    %v143 = vadd.s32 %v142, %v140
    %vm144 = vcmp.eq.s32.totalorder %v26, %v143
    %v145 = vsel %vm144, -inf, %v123
    %v146 = vsel %vm35, %v145, -inf
    %147 = vmax.xlane.f32.xlu0 %v146
    %v148 = vpop.xlane.xlu0 %147
    %vm149 = vcmp.eq.f32.partialorder %v145, %v148
    %v150 = vsel %vm149, %v26, 128
    %v151 = vsel %vm35, %v150, 2147483647
    %v152 = vand.u32 %v151, 65535
    %v153 = vshra.s32 %v151, 16
    %v154 = vcvt.s32.f32 %v152
    %v155 = vcvt.s32.f32 %v153
    %156 = vmin.xlane.f32.xlu0 %v155
    %v157 = vpop.xlane.xlu0 %156
    %vm158 = vcmp.eq.f32.partialorder %v155, %v157
    %v159 = vsel %vm158, %v154, inf
    %160 = vmin.xlane.f32.xlu0 %v159
    %v161 = vpop.xlane.xlu0 %160
    %v162 = vcvt.f32.s32 %v161
    %v163 = vcvt.f32.s32 %v157
    %v164 = vshll.u32 %v163, 16
    %v165 = vadd.s32 %v164, %v162
    %vm166 = vcmp.eq.s32.totalorder %v26, %v165
    %v167 = vsel %vm166, -inf, %v145
    %v168 = vsel %vm35, %v167, -inf
    %169 = vmax.xlane.f32.xlu0 %v168
    %v170 = vpop.xlane.xlu0 %169
    %vm171 = vcmp.eq.f32.partialorder %v167, %v170
    %v172 = vsel %vm171, %v26, 128
    %v173 = vsel %vm35, %v172, 2147483647
    %v174 = vand.u32 %v173, 65535
    %v175 = vshra.s32 %v173, 16
    %v176 = vcvt.s32.f32 %v174
    %v177 = vcvt.s32.f32 %v175
    %178 = vmin.xlane.f32.xlu0 %v177
    %v179 = vpop.xlane.xlu0 %178
    %vm180 = vcmp.eq.f32.partialorder %v177, %v179
    %v181 = vsel %vm180, %v176, inf
    %182 = vmin.xlane.f32.xlu0 %v181
    %v183 = vpop.xlane.xlu0 %182
    %v184 = vcvt.f32.s32 %v183
    %v185 = vcvt.f32.s32 %v179
    %v186 = vshll.u32 %v185, 16
    %v187 = vadd.s32 %v186, %v184
    %vm188 = vcmp.eq.s32.totalorder %v26, %v187
    %v189 = vsel %vm188, -inf, %v167
    %v190 = vsel %vm35, %v189, -inf
    %191 = vmax.xlane.f32.xlu0 %v190
    %v192 = vpop.xlane.xlu0 %191
    %vm193 = vcmp.eq.f32.partialorder %v189, %v192
    %v194 = vsel %vm193, %v26, 128
    %v195 = vsel %vm35, %v194, 2147483647
    %v196 = vand.u32 %v195, 65535
    %v197 = vshra.s32 %v195, 16
    %v198 = vcvt.s32.f32 %v196
    %v199 = vcvt.s32.f32 %v197
    %200 = vmin.xlane.f32.xlu0 %v199
    %v201 = vpop.xlane.xlu0 %200
    %vm202 = vcmp.eq.f32.partialorder %v199, %v201
    %v203 = vsel %vm202, %v198, inf
    %204 = vmin.xlane.f32.xlu0 %v203
    %v205 = vpop.xlane.xlu0 %204
    %v206 = vcvt.f32.s32 %v205
    %v207 = vcvt.f32.s32 %v201
    %v208 = vshll.u32 %v207, 16
    %v209 = vadd.s32 %v208, %v206
    %vm210 = vcmp.eq.s32.totalorder %v26, %v209
    %v211 = vsel %vm210, -inf, %v189
    %vm212 = vcmp.lt.f32.partialorder %v211, %v34
    %v213 = vsel %vm212, 1, 0
    %v214 = vcvt.s32.f32 %v213
    %215 = vst [vmem:[#allocation5] sm:$0x3] %v214
    // Predicated region
    $region14: #{tpu_custom_call.1} parent=1 // pred_check
      _
    $region15: #{tpu_custom_call.1} parent=1 // pred_check_branch
      %217 = sbr.rel (0) target = $region17
    $region16: #{tpu_custom_call.1} parent=1 // pred_region
      %s219 = ssub.s32 32, 32
      %220 = vsyncadd [#allocation4], %s219
      %s222 = sshll.u32 [#allocation5], 4
      %s223 = int_to_ptr.vmem [resolvable:$true] %s222
      %225 = dma.vmem_to_hbm [thread:$0]  %s223, 32, %s2, [#allocation4]
    $region17: #{tpu_custom_call.1} parent=1 // pred_fallthru
      _
    // Predicated region
    $region18: #{tpu_custom_call.1} parent=1 // pred_check
      _
    $region19: #{tpu_custom_call.1} parent=1 // pred_check_branch
      %227 = sbr.rel (0) target = $region21
    $region20: #{tpu_custom_call.1} parent=1 // pred_region
      %228 = dma.done [#allocation4], 32
    $region21: #{tpu_custom_call.1} parent=1 // pred_fallthru
      _
    %229 = vsyncpa [#allocation3], 1
    %230 = vsyncpa [#allocation4], 1

</llo_original>
